<compile_context>
chip_gen: v7x
topology: tpu7x:2x2x1
jax: 0.10.0
libtpu: 0.0.40
codegen_flags: <defaults>
</compile_context>

<pallas_src>
import jax
import jax.numpy as jnp
from jax.experimental import pallas as pl
from jax.experimental.pallas import tpu as pltpu


def _round_up(x, m):
    return (x + m - 1) // m * m


def _vmem_limit_bytes():
    """VMEM budget per generation: ~3/4 of physical, capped at 96 MiB.
    v5e/v6e (128 MiB) -> 96 MiB, v7x (64 MiB) -> 48 MiB, fallback 32 MiB."""
    try:
        cap = getattr(pltpu.get_tpu_info(), "vmem_capacity_bytes", None)
    except Exception:
        cap = None
    if not cap:
        return 32 << 20
    return min(int(cap) * 3 // 4, 96 << 20)


_TILE_CANDIDATES = (2048, 1024, 512, 256, 128)


def _pick_tile(extent, cap):
    """Largest power-of-two tile <= cap dividing `extent` (extent is a multiple of 128)."""
    for c in _TILE_CANDIDATES:
        if c <= cap and extent % c == 0:
            return c
    return 128


# ---------------------------------------------------------------------------
# Kernels
# ---------------------------------------------------------------------------
def _matmul_kernel(a_ref, b_ref, o_ref):
    # Single reduction step: o_tile = a_tile @ b_tile.
    o_ref[...] = jnp.dot(
        a_ref[...], b_ref[...], preferred_element_type=jnp.float32
    ).astype(o_ref.dtype)


def _make_acc_kernel(k_axis, use_scratch, h_slice_tk=None):
    """Tiled matmul with a reduction over grid axis `k_axis`.

    use_scratch : accumulate into an f32 VMEM scratch (needed for non-f32 outputs);
                  otherwise accumulate directly into the resident output block.
    h_slice_tk  : if set, the RHS ref holds the FULL VMEM-resident matrix and the
                  kernel slices rows [k*tk, (k+1)*tk) itself (fetched from HBM once).
    """

    def kernel(a_ref, b_ref, o_ref, *scratch):
        acc = scratch[0] if use_scratch else o_ref
        k = pl.program_id(k_axis)

        @pl.when(k == 0)
        def _init():
            acc[...] = jnp.zeros_like(acc)

        if h_slice_tk is None:
            b = b_ref[...]
        else:
            start = pl.multiple_of(k * h_slice_tk, h_slice_tk)
            b = b_ref[pl.ds(start, h_slice_tk), :]

        acc[...] += jnp.dot(a_ref[...], b, preferred_element_type=jnp.float32)

        if use_scratch:
            @pl.when(k == pl.num_programs(k_axis) - 1)
            def _writeback():
                o_ref[...] = acc[...].astype(o_ref.dtype)

    return kernel


# ---------------------------------------------------------------------------
# Wrapper
# ---------------------------------------------------------------------------
def gcn_conv(x, w, adj=None, *, prop_dtype=None):
    """GCNConv forward.

    x:   [N, F_in]
    w:   [F_out, F_in]   (PyTorch nn.Linear layout)
    adj: optional [N, N] dense adjacency
    prop_dtype: optional dtype (e.g. jnp.bfloat16) for the adj @ h matmul inputs
                (accumulation stays f32).
    Returns [N, F_out].
    """
    n, f_in = x.shape
    f_out = w.shape[0]
    dtype = x.dtype
    isz = jnp.dtype(dtype).itemsize

    f_in_p = _round_up(f_in, 128)
    f_out_p = _round_up(f_out, 128)
    n_p = _round_up(n, 128)

    limit = _vmem_limit_bytes()

    # ---------------- pass 1: h = x @ W.T ---------------------------------
    if (n_p, f_in_p) == (n, f_in):
        x_p = x
    else:
        x_p = jnp.zeros((n_p, f_in_p), dtype).at[:n, :f_in].set(x)
    # Padded, transposed weight built in a single tiny prep step.
    wt_p = jnp.zeros((f_in_p, f_out_p), dtype).at[:f_in, :f_out].set(w.T.astype(dtype))

    t_m = _pick_tile(n_p, 2048)
    if n_p // t_m == 1 and t_m >= 16:
        t_m //= 2  # >= 2 row blocks so v7x's 2 TensorCores are both fed
    t_n = _pick_tile(f_out_p, 1024)
    t_kf = _pick_tile(f_in_p, 2048)

    def lin_vmem(tm, tn, tk):
        scr = tm * tn * 4 if (f_in_p // tk > 1 and dtype != jnp.float32) else 0
        return 2 * (tm * tk + tk * tn) * isz + 2 * tm * tn * isz + scr

    while lin_vmem(t_m, t_n, t_kf) > limit and t_kf > 128:
        t_kf //= 2
    while lin_vmem(t_m, t_n, t_kf) > limit and t_m > 128:
        t_m //= 2
    while lin_vmem(t_m, t_n, t_kf) > limit and t_n > 128:
        t_n //= 2

    k_steps = f_in_p // t_kf
    lin_scratch_needed = k_steps > 1 and dtype != jnp.float32
    lin_kernel = (
        _matmul_kernel if k_steps == 1 else _make_acc_kernel(2, lin_scratch_needed)
    )
    lin_scratch = [pltpu.VMEM((t_m, t_n), jnp.float32)] if lin_scratch_needed else []

    h_p = pl.pallas_call(
        lin_kernel,
        out_shape=jax.ShapeDtypeStruct((n_p, f_out_p), dtype),
        grid=(n_p // t_m, f_out_p // t_n, k_steps),
        in_specs=[
            pl.BlockSpec((t_m, t_kf), lambda i, j, k: (i, k)),
            pl.BlockSpec((t_kf, t_n), lambda i, j, k: (k, j)),
        ],
        out_specs=pl.BlockSpec((t_m, t_n), lambda i, j, k: (i, j)),
        scratch_shapes=lin_scratch,
        compiler_params=pltpu.CompilerParams(
            dimension_semantics=("parallel", "parallel", "arbitrary"),
            vmem_limit_bytes=limit,
        ),
        cost_estimate=pl.CostEstimate(
            flops=2 * n_p * f_in_p * f_out_p,
            transcendentals=0,
            bytes_accessed=isz
            * (
                n_p * f_in_p * (f_out_p // t_n)
                + f_in_p * f_out_p * (n_p // t_m)
                + n_p * f_out_p
            ),
        ),
    )(x_p, wt_p)

    if adj is None:
        return h_p if (n_p, f_out_p) == (n, f_out) else h_p[:n, :f_out]

    # ---------------- pass 2: out = adj @ h --------------------------------
    # Pass adj straight through when N is already 128-aligned (no O(N^2) pad copy).
    if n_p == n:
        adj_p = adj if adj.dtype == dtype else adj.astype(dtype)
    else:
        adj_p = jnp.zeros((n_p, n_p), dtype).at[:n, :n].set(adj.astype(dtype))

    h_in = h_p
    if prop_dtype is not None:
        adj_p = adj_p.astype(prop_dtype)
        h_in = h_p.astype(prop_dtype)
    p_isz = jnp.dtype(adj_p.dtype).itemsize

    t_i = _pick_tile(n_p, 1024)
    t_k = _pick_tile(n_p, 1024)
    if n_p // t_i == 1 and t_i >= 16:
        t_i //= 2  # megacore occupancy on v7x

    h_bytes = n_p * f_out_p * p_isz
    # Keep h VMEM-resident across all row tiles when it comfortably fits
    # (counted double-buffered, leaving >= 2/3 of the budget for adj/out tiles).
    resident = 2 * h_bytes <= limit // 3

    def prop_vmem(ti, tk):
        h_v = 2 * h_bytes if resident else 2 * tk * f_out_p * p_isz
        scr = ti * f_out_p * 4 if dtype != jnp.float32 else 0
        return 2 * ti * tk * p_isz + h_v + 2 * ti * f_out_p * isz + scr

    while prop_vmem(t_i, t_k) > limit and t_k > 128:
        t_k //= 2
    while prop_vmem(t_i, t_k) > limit and t_i > 128:
        t_i //= 2

    k_steps = n_p // t_k
    prop_scratch_needed = k_steps > 1 and dtype != jnp.float32
    use_resident = resident and k_steps > 1

    if k_steps == 1:
        prop_kernel = _matmul_kernel
    else:
        prop_kernel = _make_acc_kernel(
            1, prop_scratch_needed, h_slice_tk=t_k if use_resident else None
        )
    prop_scratch = (
        [pltpu.VMEM((t_i, f_out_p), jnp.float32)] if prop_scratch_needed else []
    )

    if use_resident:
        # Constant block index -> fetched once, stays resident in VMEM.
        h_spec = pl.BlockSpec((n_p, f_out_p), lambda i, k: (0, 0))
    else:
        h_spec = pl.BlockSpec((t_k, f_out_p), lambda i, k: (k, 0))

    out_p = pl.pallas_call(
        prop_kernel,
        out_shape=jax.ShapeDtypeStruct((n_p, f_out_p), dtype),
        grid=(n_p // t_i, k_steps),
        in_specs=[
            pl.BlockSpec((t_i, t_k), lambda i, k: (i, k)),
            h_spec,
        ],
        out_specs=pl.BlockSpec((t_i, f_out_p), lambda i, k: (i, 0)),
        scratch_shapes=prop_scratch,
        compiler_params=pltpu.CompilerParams(
            dimension_semantics=("parallel", "arbitrary"),
            vmem_limit_bytes=limit,
        ),
        cost_estimate=pl.CostEstimate(
            flops=2 * n_p * n_p * f_out_p,
            transcendentals=0,
            bytes_accessed=p_isz * n_p * n_p
            + p_isz * n_p * f_out_p * (1 if (use_resident or k_steps == 1) else n_p // t_i)
            + isz * n_p * f_out_p,
        ),
    )(adj_p, h_in)

    return out_p if (n_p, f_out_p) == (n, f_out) else out_p[:n, :f_out]


# TODO(synk): sparse adjacency (torch.sparse.mm) path is not implemented; the
# original module's forward only uses a dense mm, which is what is kernelized.


if __name__ == "__main__":
    # Small synthetic problem: N=64 nodes, in_features=32, out_features=16.
    N, F_IN, F_OUT = 64, 32, 16

    key = jax.random.PRNGKey(0)
    k_x, k_w, k_a = jax.random.split(key, 3)

    x = jax.random.normal(k_x, (N, F_IN), dtype=jnp.float32)

    # Deterministic weight init mimicking nn.Linear default (kaiming-uniform-ish).
    bound = 1.0 / (F_IN ** 0.5)
    w = jax.random.uniform(
        k_w, (F_OUT, F_IN), dtype=jnp.float32, minval=-bound, maxval=bound
    )

    # Symmetric row-normalized dense adjacency, deterministic.
    a_raw = jax.random.uniform(k_a, (N, N), dtype=jnp.float32)
    adj = (a_raw + a_raw.T) * 0.5
    adj = adj / jnp.sum(adj, axis=-1, keepdims=True)

    # Propagation path (ragged N -> padded fallback).
    out = jax.block_until_ready(gcn_conv(x, w, adj))
    # Pure linear path (adj=None).
    out_lin = jax.block_until_ready(gcn_conv(x, w, None))

    ref_lin = x @ w.T
    ref = adj @ ref_lin
    assert jnp.allclose(out_lin, ref_lin, atol=1e-5, rtol=1e-5)
    assert jnp.allclose(out, ref, atol=1e-5, rtol=1e-5)

    # Also exercise the 128-aligned size that takes the no-pad / passthrough path.
    N2 = 256
    x2 = jax.random.normal(k_x, (N2, F_IN), dtype=jnp.float32)
    a2 = jax.random.uniform(k_a, (N2, N2), dtype=jnp.float32)
    a2 = a2 / jnp.sum(a2, axis=-1, keepdims=True)
    out2 = jax.block_until_ready(gcn_conv(x2, w, a2))
    ref2 = jnp.matmul(
        a2,
        jnp.matmul(x2, w.T, precision=jax.lax.Precision.HIGHEST),
        precision=jax.lax.Precision.HIGHEST,
    )
    assert jnp.allclose(out2, ref2, atol=1e-3, rtol=1e-3)

    print("KERNEL_OK")
</pallas_src>

<mosaic_0001>
module attributes {stable_mosaic.version = 11 : i64} {
  func.func @_matmul_kernel(%arg0: i32, %arg1: i32, %arg2: i32, %arg3: memref<64x128xf32, #tpu.memory_space<vmem>>, %arg4: memref<128x128xf32, #tpu.memory_space<vmem>>, %arg5: memref<64x128xf32, #tpu.memory_space<vmem>>) attributes {dimension_semantics = [#tpu.dimension_semantics<parallel>, #tpu.dimension_semantics<parallel>, #tpu.dimension_semantics<arbitrary>], iteration_bounds = array<i64: 2, 1, 1>, scalar_prefetch = 0 : i64, scratch_operands = 0 : i64, tpu.core_type = #tpu.core_type<tc>, window_params = [{transform_indices = @transform_0, window_bounds = array<i64: 64, 128>}, {transform_indices = @transform_1, window_bounds = array<i64: 128, 128>}, {transform_indices = @transform_2, window_bounds = array<i64: 64, 128>}]} {
    %c0 = arith.constant 0 : index
    %c0_0 = arith.constant 0 : index
    %0 = vector.load %arg3[%c0, %c0_0] : memref<64x128xf32, #tpu.memory_space<vmem>>, vector<64x128xf32>
    %c0_1 = arith.constant 0 : index
    %c0_2 = arith.constant 0 : index
    %1 = vector.load %arg4[%c0_1, %c0_2] : memref<128x128xf32, #tpu.memory_space<vmem>>, vector<128x128xf32>
    %cst = arith.constant dense<0.000000e+00> : vector<64x128xf32>
    %2 = tpu.matmul %0, %1, %cst {dimension_numbers = #tpu.dot_dimension_numbers<[1], [0], [0], [1], [0, 0, 1, 1], [], []>} : vector<64x128xf32>, vector<128x128xf32>, vector<64x128xf32> -> vector<64x128xf32>
    %c0_3 = arith.constant 0 : index
    %c0_4 = arith.constant 0 : index
    %3 = vector.load %arg5[%c0_3, %c0_4] : memref<64x128xf32, #tpu.memory_space<vmem>>, vector<64x128xf32>
    tpu.vector_store %arg5[%c0_3, %c0_4], %2 {strides = array<i32>} : memref<64x128xf32, #tpu.memory_space<vmem>>, vector<64x128xf32>,
    return
  }
  func.func @transform_0(%arg0: i32, %arg1: i32, %arg2: i32) -> (i32, i32) {
    %c0_i32 = arith.constant 0 : i32
    return %arg0, %arg2 : i32, i32
  }
  func.func @transform_1(%arg0: i32, %arg1: i32, %arg2: i32) -> (i32, i32) {
    %c0_i32 = arith.constant 0 : i32
    return %arg2, %arg1 : i32, i32
  }
  func.func @transform_2(%arg0: i32, %arg1: i32, %arg2: i32) -> (i32, i32) {
    %c0_i32 = arith.constant 0 : i32
    return %arg0, %arg1 : i32, i32
  }
}

</mosaic_0001>

<llo_original>
// kernel: tpu_custom_call.1
$region0: #{tpu_custom_call.1}
  #allocation0 [shape = 'u32[]', space=smem, size = 0x4, offset = 0x4, fixed_abs, tag = 'smem constant byte address 0x4 - core index']
  #allocation1 [shape = 'u32[144,128]{1,0:T(1,128)}', space=vmem, size = 0x12000, scoped, tag = 'internal scratch']
  %s0 = inlined_call_operand.hbm [shape: f32[128,128], index: 0, kind: input, shape index: {}]
  %s1 = inlined_call_operand.hbm [shape: f32[128,128], index: 1, kind: input, shape index: {}]
  %s2 = inlined_call_operand.hbm [shape: f32[128,128], index: 2, kind: output, shape index: {}]
  %s3 = sld [smem:[#allocation0]]
  $region49: #{tpu_custom_call.1} parent=0
    _
  %s5 = ssub.s32 1, %s3
  %s6 = scalar_select 0, %s5, %s3
  $region1: #{tpu_custom_call.1} parent=0
    #allocation2 [shape = 'u8[65536]{0}', space=vmem, size = 0x10000, scoped, tag = 'input window, operand 0']
    #allocation3 [shape = 's32[2]{0}', space=sflag, size = 0x8, scoped, tag = 'scoped memory for tpu_custom_call.1']
    #allocation4 [shape = 's32[2]{0}', space=sflag, size = 0x8, scoped, tag = 'scoped memory for tpu_custom_call.1']
    #allocation5 [shape = 'u8[65536]{0}', space=vmem, size = 0x10000, scoped, tag = 'input window, operand 1, single buffered']
    #allocation6 [shape = 's32[1]{0}', space=sflag, size = 0x4, scoped, tag = 'scoped memory for tpu_custom_call.1']
    #allocation7 [shape = 'u8[65536]{0}', space=vmem, size = 0x10000, scoped, tag = 'output window, operand 0']
    %7 = vsyncpa [#allocation3], 0
    %s8 = scalar_lea.sflag [#allocation3], 1
    %9 = vsyncpa %s8, 0
    %10 = vsyncpa [#allocation6], 0
    %11 = vsyncpa [#allocation4], 0
    %s12 = scalar_lea.sflag [#allocation4], 1
    %13 = vsyncpa %s12, 0
    loop: start=0, step=1, limit=4
    $region2: #{tpu_custom_call.1} parent=1 // loop_pre_header
      _
    $region3: #{tpu_custom_call.1} parent=1 // loop_header
      %s15 = sphi 0, %s19
      %p16 = scmp.ge.s32.totalorder %s15, 4
      %s22 = sphi 0, %s41
      %s23 = sphi 0, %s37
      %s24 = sphi 0, %s33
      %s25 = sphi 0, %s22
      %s26 = sphi 0, %s23
      %s27 = sphi 0, %s24
      %s28 = sphi 0, %s25
      %s29 = sphi 0, %s26
      %s30 = sphi 0, %s27
      %s46 = sphi 0, %s48
      %s49 = sphi 0, %s46
      %s50 = sphi 0, %s49
      %s66 = sphi 0, %s50
      %s74 = sphi 0, %s76
      %s77 = sphi 0, %s74
      %s78 = sphi 0, %s77
      %s94 = sphi 0, %s78
      %s102 = sphi 0, %s104
      %s105 = sphi 0, %s102
      %s106 = sphi 0, %s105
      %s122 = sphi 0, %s106
    $region4: #{tpu_custom_call.1} parent=1 // loop_header_branch
      %18 = sbr.rel (%p16) target = $region8
    $region5: #{tpu_custom_call.1} parent=1 // loop_body
      %s20 = ssub.s32 %s15, 1
      %s21 = ssub.s32 %s15, 2
      %s31 = sadd.s32 1, %s24
      %p32 = scmp.ge.s32.totalorder %s31, 1
      %s33 = scalar_select %p32, 0, %s31
      %s34 = sadd.s32 1, %s23
      %s35 = scalar_select %p32, %s34, %s23
      %p36 = scmp.ge.s32.totalorder %s35, 1
      %s37 = scalar_select %p36, 0, %s35
      %s38 = sadd.s32 1, %s22
      %s39 = scalar_select %p36, %s38, %s22
      %p40 = scmp.ge.s32.totalorder %s39, 2
      %s41 = scalar_select %p40, 0, %s39
      %s42 = ssub.s32 %s22, %s41
      %s43 = ssub.s32 %s24, %s33
      %s44 = sor.u32 %s42, %s43
      %p45 = scmp.eq.s32.totalorder %s44, 0
      %s47 = sadd.s32 %s46, 1
      %s48 = scalar_select %p45, %s46, %s47
      %p51 = pneg %p45
      %p52 = scmp.eq.s32.totalorder %s15, 1
      %p53 = por %p51, %p52
      %p54 = scmp.ne.s32.totalorder %s46, %s49
      %p55 = scmp.eq.s32.totalorder %s15, 0
      %p56 = por %p54, %p55
      %p57 = scmp.ne.s32.totalorder %s46, %s49
      %p58 = scmp.eq.s32.totalorder %s20, 1
      %p59 = por %p57, %p58
      %p60 = scmp.ne.s32.totalorder %s49, %s50
      %p61 = scmp.eq.s32.totalorder %s20, 0
      %p62 = por %p60, %p61
      %p63 = scmp.ne.s32.totalorder %s49, %s50
      %p64 = scmp.eq.s32.totalorder %s21, 1
      %p65 = por %p63, %p64
      %p67 = scmp.ne.s32.totalorder %s50, %s66
      %p68 = scmp.eq.s32.totalorder %s21, 0
      %p69 = por %p67, %p68
      %s70 = ssub.s32 %s24, %s33
      %s71 = ssub.s32 %s23, %s37
      %s72 = sor.u32 %s70, %s71
      %p73 = scmp.eq.s32.totalorder %s72, 0
      %s75 = sadd.s32 %s74, 1
      %s76 = scalar_select %p73, %s74, %s75
      %p79 = pneg %p73
      %p80 = scmp.eq.s32.totalorder %s15, 1
      %p81 = por %p79, %p80
      %p82 = scmp.ne.s32.totalorder %s74, %s77
      %p83 = scmp.eq.s32.totalorder %s15, 0
      %p84 = por %p82, %p83
      %p85 = scmp.ne.s32.totalorder %s74, %s77
      %p86 = scmp.eq.s32.totalorder %s20, 1
      %p87 = por %p85, %p86
      %p88 = scmp.ne.s32.totalorder %s77, %s78
      %p89 = scmp.eq.s32.totalorder %s20, 0
      %p90 = por %p88, %p89
      %p91 = scmp.ne.s32.totalorder %s77, %s78
      %p92 = scmp.eq.s32.totalorder %s21, 1
      %p93 = por %p91, %p92
      %p95 = scmp.ne.s32.totalorder %s78, %s94
      %p96 = scmp.eq.s32.totalorder %s21, 0
      %p97 = por %p95, %p96
      %s98 = ssub.s32 %s22, %s41
      %s99 = ssub.s32 %s23, %s37
      %s100 = sor.u32 %s98, %s99
      %p101 = scmp.eq.s32.totalorder %s100, 0
      %s103 = sadd.s32 %s102, 1
      %s104 = scalar_select %p101, %s102, %s103
      %p107 = pneg %p101
      %p108 = scmp.eq.s32.totalorder %s15, 1
      %p109 = por %p107, %p108
      %p110 = scmp.ne.s32.totalorder %s102, %s105
      %p111 = scmp.eq.s32.totalorder %s15, 0
      %p112 = por %p110, %p111
      %p113 = scmp.ne.s32.totalorder %s102, %s105
      %p114 = scmp.eq.s32.totalorder %s20, 1
      %p115 = por %p113, %p114
      %p116 = scmp.ne.s32.totalorder %s105, %s106
      %p117 = scmp.eq.s32.totalorder %s20, 0
      %p118 = por %p116, %p117
      %p119 = scmp.ne.s32.totalorder %s105, %s106
      %p120 = scmp.eq.s32.totalorder %s21, 1
      %p121 = por %p119, %p120
      %p123 = scmp.ne.s32.totalorder %s106, %s122
      %p124 = scmp.eq.s32.totalorder %s21, 0
      %p125 = por %p123, %p124
      %p126 = scmp.le.s32.totalorder 1, %s15
      %p127 = scmp.lt.s32.totalorder %s15, 3
      %p128 = pnand %p126, %p127
      %p129 = pneg %p128
      // Predicated region
      $region9: #{tpu_custom_call.1} parent=5 // pred_check
        _
      $region10: #{tpu_custom_call.1} parent=5 // pred_check_branch
        %131 = sbr.rel (%p128) target = $region12
      $region11: #{tpu_custom_call.1} parent=5 // pred_region
        %s132 = ssub.s32 %s15, 1
        // Predicated region
        $region13: #{tpu_custom_call.1} parent=11 // pred_check
          %p133 = pneg %p90
        $region14: #{tpu_custom_call.1} parent=11 // pred_check_branch
          %135 = sbr.rel (%p133) target = $region16
        $region15: #{tpu_custom_call.1} parent=11 // pred_region
          %s136 = smul.u32 16, %s27
          %s138 = ssub.s32 2048, 2048
          %139 = vsyncadd [#allocation6], %s138
          %s140 = sadd.s32 %s26, %s136
          %s141 = smul.addr %s140, 128
          %s142 = scalar_lea.hbm %s1, %s141
          %s143 = sshll.u32 [#allocation5], 4
          %s144 = int_to_ptr.vmem [resolvable:$true] %s143
          %149 = dma.hbm_to_vmem [thread:$0]  %s142, 2048, %s144, [#allocation6], 128, 128, 8
        $region16: #{tpu_custom_call.1} parent=11 // pred_fallthru
          _
      $region12: #{tpu_custom_call.1} parent=5 // pred_fallthru
        _
      %p150 = scmp.lt.s32.totalorder %s15, 2
      // Predicated region
      $region17: #{tpu_custom_call.1} parent=5 // pred_check
        %p151 = pneg %p150
      $region18: #{tpu_custom_call.1} parent=5 // pred_check_branch
        %153 = sbr.rel (%p151) target = $region20
      $region19: #{tpu_custom_call.1} parent=5 // pred_region
        // Predicated region
        $region21: #{tpu_custom_call.1} parent=19 // pred_check
          %p154 = pneg %p56
        $region22: #{tpu_custom_call.1} parent=19 // pred_check_branch
          %156 = sbr.rel (%p154) target = $region24
        $region23: #{tpu_custom_call.1} parent=19 // pred_region
          %s157 = sand.u32 %s46, 1
          %s158 = scalar_lea.sflag [#allocation3], %s157
          %s159 = sand.u32 %s46, 1
          %s160 = smul.addr %s159, 64
          %s161 = scalar_lea.vmem [#allocation2], %s160
          %s162 = smul.u32 8, %s22
          %s164 = ssub.s32 1024, 1024
          %165 = vsyncadd %s158, %s164
          %s166 = sadd.s32 %s24, %s162
          %s167 = smul.addr %s166, 128
          %s168 = scalar_lea.hbm %s0, %s167
          %s169 = sshll.u32 %s161, 4
          %s170 = int_to_ptr.vmem [resolvable:$true] %s169
          %175 = dma.hbm_to_vmem [thread:$0]  %s168, 1024, %s170, %s158, 128, 128, 8
        $region24: #{tpu_custom_call.1} parent=19 // pred_fallthru
          _
      $region20: #{tpu_custom_call.1} parent=5 // pred_fallthru
        _
      %p176 = scmp.le.s32.totalorder 1, %s15
      %p177 = scmp.lt.s32.totalorder %s15, 3
      %p178 = pnand %p176, %p177
      %p179 = pneg %p178
      // Predicated region
      $region25: #{tpu_custom_call.1} parent=5 // pred_check
        _
      $region26: #{tpu_custom_call.1} parent=5 // pred_check_branch
        %181 = sbr.rel (%p178) target = $region28
      $region27: #{tpu_custom_call.1} parent=5 // pred_region
        %s182 = ssub.s32 %s15, 1
        %s183 = sand.u32 %s49, 1
        %s184 = scalar_lea.sflag [#allocation3], %s183
        %s185 = sand.u32 %s49, 1
        %s186 = smul.addr %s185, 64
        %s187 = scalar_lea.vmem [#allocation2], %s186
        // Predicated region
        $region29: #{tpu_custom_call.1} parent=27 // pred_check
          %p188 = pneg %p62
        $region30: #{tpu_custom_call.1} parent=27 // pred_check_branch
          %190 = sbr.rel (%p188) target = $region32
        $region31: #{tpu_custom_call.1} parent=27 // pred_region
          %191 = dma.done %s184, 1024
        $region32: #{tpu_custom_call.1} parent=27 // pred_fallthru
          _
        // Predicated region
        $region33: #{tpu_custom_call.1} parent=27 // pred_check
          %p192 = pneg %p90
        $region34: #{tpu_custom_call.1} parent=27 // pred_check_branch
          %194 = sbr.rel (%p192) target = $region36
        $region35: #{tpu_custom_call.1} parent=27 // pred_region
          %195 = dma.done [#allocation6], 2048
        $region36: #{tpu_custom_call.1} parent=27 // pred_fallthru
          _
        %s196 = sand.u32 %s49, 1
        %s197 = scalar_lea.sflag [#allocation3], %s196
        %s198 = sand.u32 %s49, 1
        %s199 = smul.addr %s198, 64
        %s200 = scalar_lea.vmem [#allocation2], %s199
        %p201 = pneg %p62
        %p202 = pneg %p59
        %p203 = pneg %p90
        %p204 = pneg %p87
        %p205 = pneg %p118
        %p206 = pneg %p115
        %s207 = sand.u32 %s105, 1
        %s208 = scalar_lea.sflag [#allocation4], %s207
        %s209 = sand.u32 %s105, 1
        %s210 = smul.addr %s209, 64
        %s211 = scalar_lea.vmem [#allocation7], %s210
        %s212 = smul.u32 8, %s25
        %s213 = smul.u32 16, %s27
        %s214 = smul.u32 8, %s25
        %v215 = vld [vmem:[%s187] sm:$0xff]
        %v216 = vld [vmem:[%s187 + $0x8] sm:$0xff]
        %v217 = vld [vmem:[%s187 + $0x10] sm:$0xff]
        %v218 = vld [vmem:[%s187 + $0x18] sm:$0xff]
        %v219 = vld [vmem:[%s187 + $0x20] sm:$0xff]
        %v220 = vld [vmem:[%s187 + $0x28] sm:$0xff]
        %v221 = vld [vmem:[%s187 + $0x30] sm:$0xff]
        %v222 = vld [vmem:[%s187 + $0x38] sm:$0xff]
        %v223 = vld [vmem:[#allocation5] sm:$0xff]
        %v224 = vld [vmem:[#allocation5 + $0x8] sm:$0xff]
        %v225 = vld [vmem:[#allocation5 + $0x10] sm:$0xff]
        %v226 = vld [vmem:[#allocation5 + $0x18] sm:$0xff]
        %v227 = vld [vmem:[#allocation5 + $0x20] sm:$0xff]
        %v228 = vld [vmem:[#allocation5 + $0x28] sm:$0xff]
        %v229 = vld [vmem:[#allocation5 + $0x30] sm:$0xff]
        %v230 = vld [vmem:[#allocation5 + $0x38] sm:$0xff]
        %v231 = vld [vmem:[#allocation5 + $0x40] sm:$0xff]
        %v232 = vld [vmem:[#allocation5 + $0x48] sm:$0xff]
        %v233 = vld [vmem:[#allocation5 + $0x50] sm:$0xff]
        %v234 = vld [vmem:[#allocation5 + $0x58] sm:$0xff]
        %v235 = vld [vmem:[#allocation5 + $0x60] sm:$0xff]
        %v236 = vld [vmem:[#allocation5 + $0x68] sm:$0xff]
        %v237 = vld [vmem:[#allocation5 + $0x70] sm:$0xff]
        %v238 = vld [vmem:[#allocation5 + $0x78] sm:$0xff]
        %239 = vmatprep.subr.mxu0 0.0
        %240 = vmatpush1.msra.mxu0 %v223
        %241 = vmatprep.subr.mxu0 0.0
        %242 = vmatpush1.msra.mxu0 %v224
        %243 = vmatprep.subr.mxu0 0.0
        %244 = vmatpush1.msra.mxu0 %v225
        %245 = vmatprep.subr.mxu0 0.0
        %246 = vmatpush1.msra.mxu0 %v226
        %247 = vmatprep.subr.mxu0 0.0
        %248 = vmatpush1.msra.mxu0 %v227
        %249 = vmatprep.subr.mxu0 0.0
        %250 = vmatpush1.msra.mxu0 %v228
        %251 = vmatprep.subr.mxu0 0.0
        %252 = vmatpush1.msra.mxu0 %v229
        %253 = vmatprep.subr.mxu0 0.0
        %254 = vmatpush1.msra.mxu0 %v230
        %255 = vmatprep.subr.mxu0 0.0
        %256 = vmatpush1.msra.mxu0 %v231
        %257 = vmatprep.subr.mxu0 0.0
        %258 = vmatpush1.msra.mxu0 %v232
        %259 = vmatprep.subr.mxu0 0.0
        %260 = vmatpush1.msra.mxu0 %v233
        %261 = vmatprep.subr.mxu0 0.0
        %262 = vmatpush1.msra.mxu0 %v234
        %263 = vmatprep.subr.mxu0 0.0
        %264 = vmatpush1.msra.mxu0 %v235
        %265 = vmatprep.subr.mxu0 0.0
        %266 = vmatpush1.msra.mxu0 %v236
        %267 = vmatprep.subr.mxu0 0.0
        %268 = vmatpush1.msra.mxu0 %v237
        %269 = vmatprep.subr.mxu0 0.0
        %270 = vmatpush1.msra.mxu0 %v238
        %271 = vmatprep.subr.mxu0 0.0
        %272 = vmatpush1.msra.mxu0 0.0
        %273 = vmatprep.subr.mxu0 0.0
        %274 = vmatpush1.msra.mxu0 0.0
        %275 = vmatprep.subr.mxu0 0.0
        %276 = vmatpush1.msra.mxu0 0.0
        %277 = vmatprep.subr.mxu0 0.0
        %278 = vmatpush1.msra.mxu0 0.0
        %279 = vmatprep.subr.mxu0 0.0
        %280 = vmatpush1.msra.mxu0 0.0
        %281 = vmatprep.subr.mxu0 0.0
        %282 = vmatpush1.msra.mxu0 0.0
        %283 = vmatprep.subr.mxu0 0.0
        %284 = vmatpush1.msra.mxu0 0.0
        %285 = vmatprep.subr.mxu0 0.0
        %286 = vmatpush1.msra.mxu0 0.0
        %287 = vmatprep.subr.mxu0 0.0
        %288 = vmatpush1.msra.mxu0 0.0
        %289 = vmatprep.subr.mxu0 0.0
        %290 = vmatpush1.msra.mxu0 0.0
        %291 = vmatprep.subr.mxu0 0.0
        %292 = vmatpush1.msra.mxu0 0.0
        %293 = vmatprep.subr.mxu0 0.0
        %294 = vmatpush1.msra.mxu0 0.0
        %295 = vmatprep.subr.mxu0 0.0
        %296 = vmatpush1.msra.mxu0 0.0
        %297 = vmatprep.subr.mxu0 0.0
        %298 = vmatpush1.msra.mxu0 0.0
        %299 = vmatprep.subr.mxu0 0.0
        %300 = vmatpush1.msra.mxu0 0.0
        %301 = vmatprep.subr.mxu0 0.0
        %302 = vmatpush1.msra.mxu0 0.0
        %303 = vmatprep.mubr.f32.mxu0 0.0
        %304 = vmatmul.mubr.f32.gmra.mrb[0].mxu0 %v215
        %v305 = vpop.f32.mrb[0].mxu0
        %v306 = vadd.f32 0.0, %v305
        %v307 = vpop.f32.mrb[0].mxu0
        %308 = vmatprep.mubr.f32.mxu0 0.0
        %309 = vmatmul.mubr.f32.gmra.mrb[0].mxu0 %v216
        %v310 = vpop.f32.mrb[0].mxu0
        %v311 = vadd.f32 0.0, %v310
        %v312 = vpop.f32.mrb[0].mxu0
        %313 = vmatprep.mubr.f32.mxu0 0.0
        %314 = vmatmul.mubr.f32.gmra.mrb[0].mxu0 %v217
        %v315 = vpop.f32.mrb[0].mxu0
        %v316 = vadd.f32 0.0, %v315
        %v317 = vpop.f32.mrb[0].mxu0
        %318 = vmatprep.mubr.f32.mxu0 0.0
        %319 = vmatmul.mubr.f32.gmra.mrb[0].mxu0 %v218
        %v320 = vpop.f32.mrb[0].mxu0
        %v321 = vadd.f32 0.0, %v320
        %v322 = vpop.f32.mrb[0].mxu0
        %323 = vmatprep.mubr.f32.mxu0 0.0
        %324 = vmatmul.mubr.f32.gmra.mrb[0].mxu0 %v219
        %v325 = vpop.f32.mrb[0].mxu0
        %v326 = vadd.f32 0.0, %v325
        %v327 = vpop.f32.mrb[0].mxu0
        %328 = vmatprep.mubr.f32.mxu0 0.0
        %329 = vmatmul.mubr.f32.gmra.mrb[0].mxu0 %v220
        %v330 = vpop.f32.mrb[0].mxu0
        %v331 = vadd.f32 0.0, %v330
        %v332 = vpop.f32.mrb[0].mxu0
        %333 = vmatprep.mubr.f32.mxu0 0.0
        %334 = vmatmul.mubr.f32.gmra.mrb[0].mxu0 %v221
        %v335 = vpop.f32.mrb[0].mxu0
        %v336 = vadd.f32 0.0, %v335
        %v337 = vpop.f32.mrb[0].mxu0
        %338 = vmatprep.mubr.f32.mxu0 0.0
        %339 = vmatmul.mubr.f32.gmra.mrb[0].mxu0 %v222
        %v340 = vpop.f32.mrb[0].mxu0
        %v341 = vadd.f32 0.0, %v340
        %v342 = vpop.f32.mrb[0].mxu0
        %343 = vdwg.mxu0
        %344 = vst [vmem:[%s211] sm:$0xff] %v306
        %345 = vst [vmem:[%s211 + $0x8] sm:$0xff] %v311
        %346 = vst [vmem:[%s211 + $0x10] sm:$0xff] %v316
        %347 = vst [vmem:[%s211 + $0x18] sm:$0xff] %v321
        %348 = vst [vmem:[%s211 + $0x20] sm:$0xff] %v326
        %349 = vst [vmem:[%s211 + $0x28] sm:$0xff] %v331
        %350 = vst [vmem:[%s211 + $0x30] sm:$0xff] %v336
        %351 = vst [vmem:[%s211 + $0x38] sm:$0xff] %v341
        %s352 = sand.u32 %s105, 1
        %s353 = scalar_lea.sflag [#allocation4], %s352
        %s354 = sand.u32 %s105, 1
        %s355 = smul.addr %s354, 64
        %s356 = scalar_lea.vmem [#allocation7], %s355
        // Predicated region
        $region37: #{tpu_custom_call.1} parent=27 // pred_check
          %p357 = pneg %p115
        $region38: #{tpu_custom_call.1} parent=27 // pred_check_branch
          %359 = sbr.rel (%p357) target = $region40
        $region39: #{tpu_custom_call.1} parent=27 // pred_region
          %s360 = smul.u32 8, %s25
          %s362 = ssub.s32 1024, 1024
          %363 = vsyncadd %s353, %s362
          %s364 = sadd.s32 %s26, %s360
          %s365 = smul.addr %s364, 128
          %s366 = scalar_lea.hbm %s2, %s365
          %s367 = sshll.u32 %s356, 4
          %s368 = int_to_ptr.vmem [resolvable:$true] %s367
          %373 = dma.vmem_to_hbm [thread:$0]  %s368, 1024, %s366, %s353, 128, 128, 8
        $region40: #{tpu_custom_call.1} parent=27 // pred_fallthru
          _
      $region28: #{tpu_custom_call.1} parent=5 // pred_fallthru
        _
      %p374 = scmp.le.s32.totalorder 2, %s15
      // Predicated region
      $region41: #{tpu_custom_call.1} parent=5 // pred_check
        %p375 = pneg %p374
      $region42: #{tpu_custom_call.1} parent=5 // pred_check_branch
        %377 = sbr.rel (%p375) target = $region44
      $region43: #{tpu_custom_call.1} parent=5 // pred_region
        %s378 = ssub.s32 %s15, 2
        // Predicated region
        $region45: #{tpu_custom_call.1} parent=43 // pred_check
          %p379 = pneg %p121
        $region46: #{tpu_custom_call.1} parent=43 // pred_check_branch
          %381 = sbr.rel (%p379) target = $region48
        $region47: #{tpu_custom_call.1} parent=43 // pred_region
          %s382 = sand.u32 %s106, 1
          %s383 = scalar_lea.sflag [#allocation4], %s382
          %s384 = sand.u32 %s106, 1
          %s385 = smul.addr %s384, 64
          %s386 = scalar_lea.vmem [#allocation7], %s385
          %387 = dma.done %s383, 1024
        $region48: #{tpu_custom_call.1} parent=43 // pred_fallthru
          _
      $region44: #{tpu_custom_call.1} parent=5 // pred_fallthru
        _
    $region6: #{tpu_custom_call.1} parent=1 // loop_footer
      %s19 = sadd.s32 1, %s15
    $region7: #{tpu_custom_call.1} parent=1 // loop_footer_branch
      %14 = sbr.rel target = $region3
    $region8: #{tpu_custom_call.1} parent=1 // loop_exit
      _
    %388 = vsyncpa [#allocation3], 1
    %s389 = scalar_lea.sflag [#allocation3], 1
    %390 = vsyncpa %s389, 1
    %391 = vsyncpa [#allocation6], 1
    %392 = vsyncpa [#allocation4], 1
    %s393 = scalar_lea.sflag [#allocation4], 1
    %394 = vsyncpa %s393, 1

</llo_original>
